<compile_context>
chip_gen: v6e
topology: v6e:2x2x1
jax: 0.10.0
libtpu: 0.0.40
codegen_flags: <defaults>
</compile_context>

<pallas_src>
import jax
import jax.numpy as jnp
from jax.experimental import pallas as pl
from jax.experimental.pallas import tpu as pltpu

NUM_BINS = 80
ALPHA = 1.0
_PAD_TARGET = -(1 << 14)                 # Gaussian weight underflows to exactly 0.0
_VMEM_LIMIT_BYTES = 48 * 1024 * 1024     # safe on v5e/v6e (128 MiB) and v7x (64 MiB)


def _round_up(x, m):
    return ((x + m - 1) // m) * m


def _plan_tiles(spatial, itemsize, tile_s=None):
    """Pick a 128-aligned spatial tile (dtype-aware cap) and padded extent."""
    cap = 8192 if itemsize <= 2 else 4096
    if tile_s is None:
        s128 = _round_up(spatial, 128)
        if s128 <= cap:
            tile_s = s128
        else:
            n_tiles = -(-s128 // cap)                     # ceil
            tile_s = _round_up(-(-s128 // n_tiles), 128)  # minimize padding
    assert tile_s % 128 == 0, "tile_s must be a multiple of 128"
    return tile_s, _round_up(spatial, tile_s)


def _ordinal_loss_kernel(logits_ref, tgt_ref, out_ref):
    # logits_ref: [1, B, tile_s]  source dtype (cast to f32 here)
    # tgt_ref:    [1, 1, tile_s]  int32 (_PAD_TARGET marks padded columns)
    # out_ref:    [1, 8, 128]     f32 disjoint per-lane partial sums
    x = logits_ref[0].astype(jnp.float32)                 # [B, tile_s]
    B, tile_s = x.shape

    # Numerically stable log_softmax along the bin (sublane) axis.
    m = jnp.max(x, axis=0, keepdims=True)                 # [1, tile_s]
    s = x - m
    lse = jnp.log(jnp.sum(jnp.exp(s), axis=0, keepdims=True))
    log_probs = s - lse                                   # [B, tile_s]

    # Information-gain weights computed directly (exact f32, no H operand,
    # MXU/MRF stay idle): w[b, s] = exp(-alpha * (b - t[s])^2) = H[t[s], b].
    t = tgt_ref[0].astype(jnp.float32)                    # [1, tile_s]
    bins = jax.lax.broadcasted_iota(jnp.int32, (B, 1), 0).astype(jnp.float32)
    d = bins - t                                          # [B, tile_s]
    w = jnp.exp((-ALPHA) * d * d)                         # [B, tile_s]  (EUP)

    wl = w * log_probs                                    # [B, tile_s]

    # Per-lane partial sums, VPU only: fold bins in 8-sublane groups, then
    # fold 128-lane chunks, using vreg-aligned static slices (no relayout,
    # no cross-lane XLU reduce, no scalar mask construction).
    part = wl[0:8, :]
    for g in range(1, B // 8):
        part = part + wl[g * 8:(g + 1) * 8, :]            # [8, tile_s]
    acc = part[:, 0:128]
    for c in range(1, tile_s // 128):
        acc = acc + part[:, c * 128:(c + 1) * 128]        # [8, 128]
    out_ref[0] = acc                                      # lane-dense store


def custom_ordinal_loss(logits, targets, *, tile_s=None):
    """logits: [N, B, S] float (f32 or bf16), targets: [N, S] int -> scalar f32.

    Streams logits directly in their HBM dtype (bf16 recommended); all math is
    f32 in-kernel.  Matches the PyTorch CustomOrdinalLoss forward.
    """
    N, B, S = logits.shape
    assert B == NUM_BINS and B % 8 == 0

    tile_s, s_pad = _plan_tiles(S, jnp.dtype(logits.dtype).itemsize, tile_s)
    n_s_tiles = s_pad // tile_s

    tgt = targets.reshape(N, 1, S).astype(jnp.int32)
    if s_pad != S:
        pad = s_pad - S
        logits = jnp.pad(logits, ((0, 0), (0, 0), (0, pad)))
        tgt = jnp.pad(tgt, ((0, 0), (0, 0), (0, pad)),
                      constant_values=_PAD_TARGET)

    partials = pl.pallas_call(
        _ordinal_loss_kernel,
        out_shape=jax.ShapeDtypeStruct((N, n_s_tiles * 8, 128), jnp.float32),
        grid_spec=pltpu.PrefetchScalarGridSpec(
            num_scalar_prefetch=0,
            grid=(N, n_s_tiles),
            in_specs=[
                pl.BlockSpec((1, B, tile_s), lambda n, si: (n, 0, si)),
                pl.BlockSpec((1, 1, tile_s), lambda n, si: (n, 0, si)),
            ],
            out_specs=pl.BlockSpec((1, 8, 128), lambda n, si: (n, si, 0)),
        ),
        compiler_params=pltpu.CompilerParams(
            dimension_semantics=("parallel", "parallel"),
            vmem_limit_bytes=_VMEM_LIMIT_BYTES,
        ),
    )(logits, tgt)

    # Padded columns contribute exactly zero; normalize by the true pixel count.
    return -jnp.sum(partials) / jnp.float32(N * S)


def _reference_loss(logits, targets):
    """Pure-JAX reference mirroring the PyTorch module exactly."""
    N, B, S = logits.shape
    rows = jnp.transpose(logits, (0, 2, 1)).reshape(-1, B).astype(jnp.float32)
    tgt = targets.reshape(-1).astype(jnp.int32)
    log_probs = jax.nn.log_softmax(rows, axis=1)
    p = jnp.arange(B, dtype=jnp.float32)[:, None]
    q = jnp.arange(B, dtype=jnp.float32)[None, :]
    h_mat = jnp.exp(-ALPHA * (p - q) ** 2)
    w = h_mat[tgt]
    pixel = jnp.sum(w * log_probs, axis=1)
    return -jnp.mean(pixel)


if __name__ == "__main__":
    key = jax.random.PRNGKey(0)
    k1, k2, k3, k4 = jax.random.split(key, 4)

    # Case 1: small spatial extent (S=16, padded to one 128-lane tile), f32.
    N, B, S = 2, NUM_BINS, 16
    logits = jax.random.normal(k1, (N, B, S), dtype=jnp.float32)
    targets = jax.random.randint(k2, (N, S), 0, B, dtype=jnp.int32)
    loss = jax.block_until_ready(custom_ordinal_loss(logits, targets))
    ref = jax.block_until_ready(_reference_loss(logits, targets))
    assert jnp.allclose(loss, ref, rtol=1e-5, atol=1e-5), (loss, ref)

    # Case 2: multi-tile, lane-dense path with bf16 streaming (S=256, tile_s=128).
    S2 = 256
    logits2 = jax.random.normal(k3, (N, B, S2), dtype=jnp.float32).astype(jnp.bfloat16)
    targets2 = jax.random.randint(k4, (N, S2), 0, B, dtype=jnp.int32)
    loss2 = jax.block_until_ready(custom_ordinal_loss(logits2, targets2, tile_s=128))
    ref2 = jax.block_until_ready(_reference_loss(logits2, targets2))
    assert jnp.allclose(loss2, ref2, rtol=1e-4, atol=1e-4), (loss2, ref2)

    print("KERNEL_OK")
</pallas_src>

<mosaic_0001>
module attributes {stable_mosaic.version = 11 : i64} {
  func.func @_ordinal_loss_kernel(%arg0: i32, %arg1: i32, %arg2: memref<1x80x128xf32, #tpu.memory_space<vmem>>, %arg3: memref<1x1x128xi32, #tpu.memory_space<vmem>>, %arg4: memref<1x8x128xf32, #tpu.memory_space<vmem>>) attributes {dimension_semantics = [#tpu.dimension_semantics<parallel>, #tpu.dimension_semantics<parallel>], iteration_bounds = array<i64: 2, 1>, scalar_prefetch = 0 : i64, scratch_operands = 0 : i64, tpu.core_type = #tpu.core_type<tc>, window_params = [{transform_indices = @transform_0, window_bounds = array<i64: 1, 80, 128>}, {transform_indices = @transform_1, window_bounds = array<i64: 1, 1, 128>}, {transform_indices = @transform_2, window_bounds = array<i64: 1, 8, 128>}]} {
    %c0 = arith.constant 0 : index
    %c0_0 = arith.constant 0 : index
    %c0_1 = arith.constant 0 : index
    %0 = vector.load %arg2[%c0, %c0_0, %c0_1] : memref<1x80x128xf32, #tpu.memory_space<vmem>>, vector<1x80x128xf32>
    %1 = vector.shape_cast %0 : vector<1x80x128xf32> to vector<80x128xf32>
    %cst = arith.constant dense<0xFF800000> : vector<128xf32>
    %2 = vector.multi_reduction <maximumf>, %1, %cst [0] : vector<80x128xf32> to vector<128xf32>
    %3 = vector.shape_cast %2 : vector<128xf32> to vector<1x128xf32>
    %4 = vector.broadcast %3 : vector<1x128xf32> to vector<80x128xf32>
    %5 = arith.subf %1, %4 : vector<80x128xf32>
    %6 = math.exp %5 : vector<80x128xf32>
    %cst_2 = arith.constant dense<0.000000e+00> : vector<128xf32>
    %7 = vector.multi_reduction <add>, %6, %cst_2 [0] : vector<80x128xf32> to vector<128xf32>
    %8 = vector.shape_cast %7 : vector<128xf32> to vector<1x128xf32>
    %9 = math.log %8 : vector<1x128xf32>
    %10 = vector.broadcast %9 : vector<1x128xf32> to vector<80x128xf32>
    %11 = arith.subf %5, %10 : vector<80x128xf32>
    %c0_3 = arith.constant 0 : index
    %c0_4 = arith.constant 0 : index
    %c0_5 = arith.constant 0 : index
    %12 = vector.load %arg3[%c0_3, %c0_4, %c0_5] : memref<1x1x128xi32, #tpu.memory_space<vmem>>, vector<1x1x128xi32>
    %13 = vector.shape_cast %12 : vector<1x1x128xi32> to vector<1x128xi32>
    %14 = arith.sitofp %13 : vector<1x128xi32> to vector<1x128xf32>
    %15 = tpu.iota {dimensions = array<i32: 0>} : vector<80x1xi32>
    %16 = arith.sitofp %15 : vector<80x1xi32> to vector<80x1xf32>
    %17 = vector.broadcast %16 : vector<80x1xf32> to vector<80x128xf32>
    %18 = vector.broadcast %14 : vector<1x128xf32> to vector<80x128xf32>
    %19 = arith.subf %17, %18 : vector<80x128xf32>
    %cst_6 = arith.constant -1.000000e+00 : f32
    %20 = vector.broadcast %cst_6 : f32 to vector<80x128xf32>
    %21 = arith.mulf %20, %19 : vector<80x128xf32>
    %22 = arith.mulf %21, %19 : vector<80x128xf32>
    %23 = math.exp %22 : vector<80x128xf32>
    %24 = arith.mulf %23, %11 : vector<80x128xf32>
    %25 = vector.extract_strided_slice %24 {offsets = [0, 0], sizes = [8, 128], strides = [1, 1]} : vector<80x128xf32> to vector<8x128xf32>
    %26 = vector.extract_strided_slice %24 {offsets = [8, 0], sizes = [8, 128], strides = [1, 1]} : vector<80x128xf32> to vector<8x128xf32>
    %27 = arith.addf %25, %26 : vector<8x128xf32>
    %28 = vector.extract_strided_slice %24 {offsets = [16, 0], sizes = [8, 128], strides = [1, 1]} : vector<80x128xf32> to vector<8x128xf32>
    %29 = arith.addf %27, %28 : vector<8x128xf32>
    %30 = vector.extract_strided_slice %24 {offsets = [24, 0], sizes = [8, 128], strides = [1, 1]} : vector<80x128xf32> to vector<8x128xf32>
    %31 = arith.addf %29, %30 : vector<8x128xf32>
    %32 = vector.extract_strided_slice %24 {offsets = [32, 0], sizes = [8, 128], strides = [1, 1]} : vector<80x128xf32> to vector<8x128xf32>
    %33 = arith.addf %31, %32 : vector<8x128xf32>
    %34 = vector.extract_strided_slice %24 {offsets = [40, 0], sizes = [8, 128], strides = [1, 1]} : vector<80x128xf32> to vector<8x128xf32>
    %35 = arith.addf %33, %34 : vector<8x128xf32>
    %36 = vector.extract_strided_slice %24 {offsets = [48, 0], sizes = [8, 128], strides = [1, 1]} : vector<80x128xf32> to vector<8x128xf32>
    %37 = arith.addf %35, %36 : vector<8x128xf32>
    %38 = vector.extract_strided_slice %24 {offsets = [56, 0], sizes = [8, 128], strides = [1, 1]} : vector<80x128xf32> to vector<8x128xf32>
    %39 = arith.addf %37, %38 : vector<8x128xf32>
    %40 = vector.extract_strided_slice %24 {offsets = [64, 0], sizes = [8, 128], strides = [1, 1]} : vector<80x128xf32> to vector<8x128xf32>
    %41 = arith.addf %39, %40 : vector<8x128xf32>
    %42 = vector.extract_strided_slice %24 {offsets = [72, 0], sizes = [8, 128], strides = [1, 1]} : vector<80x128xf32> to vector<8x128xf32>
    %43 = arith.addf %41, %42 : vector<8x128xf32>
    %c0_7 = arith.constant 0 : index
    %c0_8 = arith.constant 0 : index
    %c0_9 = arith.constant 0 : index
    %44 = vector.load %arg4[%c0_7, %c0_8, %c0_9] : memref<1x8x128xf32, #tpu.memory_space<vmem>>, vector<1x8x128xf32>
    %45 = vector.shape_cast %44 : vector<1x8x128xf32> to vector<8x128xf32>
    %46 = vector.shape_cast %43 : vector<8x128xf32> to vector<1x8x128xf32>
    tpu.vector_store %arg4[%c0_7, %c0_8, %c0_9], %46 {strides = array<i32>} : memref<1x8x128xf32, #tpu.memory_space<vmem>>, vector<1x8x128xf32>,
    return
  }
  func.func @transform_0(%arg0: i32, %arg1: i32) -> (i32, i32, i32) {
    %c0_i32 = arith.constant 0 : i32
    %c0_i32_0 = arith.constant 0 : i32
    return %arg0, %c0_i32, %arg1 : i32, i32, i32
  }
  func.func @transform_1(%arg0: i32, %arg1: i32) -> (i32, i32, i32) {
    %c0_i32 = arith.constant 0 : i32
    %c0_i32_0 = arith.constant 0 : i32
    return %arg0, %c0_i32, %arg1 : i32, i32, i32
  }
  func.func @transform_2(%arg0: i32, %arg1: i32) -> (i32, i32, i32) {
    %c0_i32 = arith.constant 0 : i32
    %c0_i32_0 = arith.constant 0 : i32
    return %arg0, %arg1, %c0_i32 : i32, i32, i32
  }
}

</mosaic_0001>

<llo_original>
// kernel: tpu_custom_call.1
$region0: #{tpu_custom_call.1}
  #allocation0 [shape = 'u32[]', space=smem, size = 0x4, offset = 0x4, fixed_abs, tag = 'smem constant byte address 0x4 - core index']
  #allocation1 [shape = 'u32[144,128]{1,0:T(1,128)}', space=vmem, size = 0x12000, scoped, tag = 'internal scratch']
  %s0 = inlined_call_operand.hbm [shape: f32[2,80,128], index: 0, kind: input, shape index: {}]
  %s1 = inlined_call_operand.hbm [shape: s32[2,1,128], index: 1, kind: input, shape index: {}]
  %s2 = inlined_call_operand.hbm [shape: f32[2,8,128], index: 2, kind: output, shape index: {}]
  %s3 = sld [smem:[#allocation0]]
  $region49: #{tpu_custom_call.1} parent=0
    _
  %s5 = ssub.s32 1, %s3
  %s6 = scalar_select 0, %s5, %s3
  $region1: #{tpu_custom_call.1} parent=0
    #allocation2 [shape = 'u8[81920]{0}', space=vmem, size = 0x14000, scoped, tag = 'input window, operand 0']
    #allocation3 [shape = 's32[2]{0}', space=sflag, size = 0x8, scoped, tag = 'scoped memory for tpu_custom_call.1']
    #allocation4 [shape = 's32[2]{0}', space=sflag, size = 0x8, scoped, tag = 'scoped memory for tpu_custom_call.1']
    #allocation5 [shape = 'u8[1024]{0}', space=vmem, size = 0x400, scoped, tag = 'input window, operand 1']
    #allocation6 [shape = 's32[2]{0}', space=sflag, size = 0x8, scoped, tag = 'scoped memory for tpu_custom_call.1']
    #allocation7 [shape = 'u8[8192]{0}', space=vmem, size = 0x2000, scoped, tag = 'output window, operand 0']
    %7 = vsyncpa [#allocation3], 0
    %s8 = scalar_lea.sflag [#allocation3], 1
    %9 = vsyncpa %s8, 0
    %10 = vsyncpa [#allocation6], 0
    %s11 = scalar_lea.sflag [#allocation6], 1
    %12 = vsyncpa %s11, 0
    %13 = vsyncpa [#allocation4], 0
    %s14 = scalar_lea.sflag [#allocation4], 1
    %15 = vsyncpa %s14, 0
    loop: start=0, step=1, limit=4
    $region2: #{tpu_custom_call.1} parent=1 // loop_pre_header
      _
    $region3: #{tpu_custom_call.1} parent=1 // loop_header
      %s17 = sphi 0, %s21
      %p18 = scmp.ge.s32.totalorder %s17, 4
      %s24 = sphi 0, %s36
      %s25 = sphi 0, %s32
      %s26 = sphi 0, %s24
      %s27 = sphi 0, %s25
      %s28 = sphi 0, %s26
      %s29 = sphi 0, %s27
      %s41 = sphi 0, %s43
      %s44 = sphi 0, %s41
      %s45 = sphi 0, %s44
      %s61 = sphi 0, %s45
      %s69 = sphi 0, %s71
      %s72 = sphi 0, %s69
      %s73 = sphi 0, %s72
      %s89 = sphi 0, %s73
      %s97 = sphi 0, %s99
      %s100 = sphi 0, %s97
      %s101 = sphi 0, %s100
      %s117 = sphi 0, %s101
    $region4: #{tpu_custom_call.1} parent=1 // loop_header_branch
      %20 = sbr.rel (%p18) target = $region8
    $region5: #{tpu_custom_call.1} parent=1 // loop_body
      %s22 = ssub.s32 %s17, 1
      %s23 = ssub.s32 %s17, 2
      %s30 = sadd.s32 1, %s25
      %p31 = scmp.ge.s32.totalorder %s30, 1
      %s32 = scalar_select %p31, 0, %s30
      %s33 = sadd.s32 1, %s24
      %s34 = scalar_select %p31, %s33, %s24
      %p35 = scmp.ge.s32.totalorder %s34, 2
      %s36 = scalar_select %p35, 0, %s34
      %s37 = ssub.s32 %s24, %s36
      %s38 = ssub.s32 %s25, %s32
      %s39 = sor.u32 %s37, %s38
      %p40 = scmp.eq.s32.totalorder %s39, 0
      %s42 = sadd.s32 %s41, 1
      %s43 = scalar_select %p40, %s41, %s42
      %p46 = pneg %p40
      %p47 = scmp.eq.s32.totalorder %s17, 1
      %p48 = por %p46, %p47
      %p49 = scmp.ne.s32.totalorder %s41, %s44
      %p50 = scmp.eq.s32.totalorder %s17, 0
      %p51 = por %p49, %p50
      %p52 = scmp.ne.s32.totalorder %s41, %s44
      %p53 = scmp.eq.s32.totalorder %s22, 1
      %p54 = por %p52, %p53
      %p55 = scmp.ne.s32.totalorder %s44, %s45
      %p56 = scmp.eq.s32.totalorder %s22, 0
      %p57 = por %p55, %p56
      %p58 = scmp.ne.s32.totalorder %s44, %s45
      %p59 = scmp.eq.s32.totalorder %s23, 1
      %p60 = por %p58, %p59
      %p62 = scmp.ne.s32.totalorder %s45, %s61
      %p63 = scmp.eq.s32.totalorder %s23, 0
      %p64 = por %p62, %p63
      %s65 = ssub.s32 %s24, %s36
      %s66 = ssub.s32 %s25, %s32
      %s67 = sor.u32 %s65, %s66
      %p68 = scmp.eq.s32.totalorder %s67, 0
      %s70 = sadd.s32 %s69, 1
      %s71 = scalar_select %p68, %s69, %s70
      %p74 = pneg %p68
      %p75 = scmp.eq.s32.totalorder %s17, 1
      %p76 = por %p74, %p75
      %p77 = scmp.ne.s32.totalorder %s69, %s72
      %p78 = scmp.eq.s32.totalorder %s17, 0
      %p79 = por %p77, %p78
      %p80 = scmp.ne.s32.totalorder %s69, %s72
      %p81 = scmp.eq.s32.totalorder %s22, 1
      %p82 = por %p80, %p81
      %p83 = scmp.ne.s32.totalorder %s72, %s73
      %p84 = scmp.eq.s32.totalorder %s22, 0
      %p85 = por %p83, %p84
      %p86 = scmp.ne.s32.totalorder %s72, %s73
      %p87 = scmp.eq.s32.totalorder %s23, 1
      %p88 = por %p86, %p87
      %p90 = scmp.ne.s32.totalorder %s73, %s89
      %p91 = scmp.eq.s32.totalorder %s23, 0
      %p92 = por %p90, %p91
      %s93 = ssub.s32 %s24, %s36
      %s94 = ssub.s32 %s25, %s32
      %s95 = sor.u32 %s93, %s94
      %p96 = scmp.eq.s32.totalorder %s95, 0
      %s98 = sadd.s32 %s97, 1
      %s99 = scalar_select %p96, %s97, %s98
      %p102 = pneg %p96
      %p103 = scmp.eq.s32.totalorder %s17, 1
      %p104 = por %p102, %p103
      %p105 = scmp.ne.s32.totalorder %s97, %s100
      %p106 = scmp.eq.s32.totalorder %s17, 0
      %p107 = por %p105, %p106
      %p108 = scmp.ne.s32.totalorder %s97, %s100
      %p109 = scmp.eq.s32.totalorder %s22, 1
      %p110 = por %p108, %p109
      %p111 = scmp.ne.s32.totalorder %s100, %s101
      %p112 = scmp.eq.s32.totalorder %s22, 0
      %p113 = por %p111, %p112
      %p114 = scmp.ne.s32.totalorder %s100, %s101
      %p115 = scmp.eq.s32.totalorder %s23, 1
      %p116 = por %p114, %p115
      %p118 = scmp.ne.s32.totalorder %s101, %s117
      %p119 = scmp.eq.s32.totalorder %s23, 0
      %p120 = por %p118, %p119
      %p121 = scmp.le.s32.totalorder 1, %s17
      %p122 = scmp.lt.s32.totalorder %s17, 3
      %p123 = pnand %p121, %p122
      %p124 = pneg %p123
      // Predicated region
      $region9: #{tpu_custom_call.1} parent=5 // pred_check
        _
      $region10: #{tpu_custom_call.1} parent=5 // pred_check_branch
        %126 = sbr.rel (%p123) target = $region12
      $region11: #{tpu_custom_call.1} parent=5 // pred_region
        %s127 = ssub.s32 %s17, 1
      $region12: #{tpu_custom_call.1} parent=5 // pred_fallthru
        _
      %p128 = scmp.lt.s32.totalorder %s17, 2
      // Predicated region
      $region13: #{tpu_custom_call.1} parent=5 // pred_check
        %p129 = pneg %p128
      $region14: #{tpu_custom_call.1} parent=5 // pred_check_branch
        %131 = sbr.rel (%p129) target = $region16
      $region15: #{tpu_custom_call.1} parent=5 // pred_region
        // Predicated region
        $region17: #{tpu_custom_call.1} parent=15 // pred_check
          %p132 = pneg %p51
        $region18: #{tpu_custom_call.1} parent=15 // pred_check_branch
          %134 = sbr.rel (%p132) target = $region20
        $region19: #{tpu_custom_call.1} parent=15 // pred_region
          %s135 = sand.u32 %s41, 1
          %s136 = scalar_lea.sflag [#allocation3], %s135
          %s137 = sand.u32 %s41, 1
          %s138 = smul.addr %s137, 80
          %s139 = scalar_lea.vmem [#allocation2], %s138
          %s141 = ssub.s32 1280, 1280
          %142 = vsyncadd %s136, %s141
          %s143 = smul.addr %s24, 10
          %s144 = sadd.s32 %s25, %s143
          %s145 = smul.addr %s144, 128
          %s146 = scalar_lea.hbm %s0, %s145
          %s147 = sshll.u32 %s139, 4
          %s148 = int_to_ptr.vmem [resolvable:$true] %s147
          %153 = dma.hbm_to_vmem [thread:$0]  %s146, 1280, %s148, %s136, 128, 128, 8
        $region20: #{tpu_custom_call.1} parent=15 // pred_fallthru
          _
        // Predicated region
        $region21: #{tpu_custom_call.1} parent=15 // pred_check
          %p154 = pneg %p79
        $region22: #{tpu_custom_call.1} parent=15 // pred_check_branch
          %156 = sbr.rel (%p154) target = $region24
        $region23: #{tpu_custom_call.1} parent=15 // pred_region
          %s157 = sand.u32 %s69, 1
          %s158 = scalar_lea.sflag [#allocation6], %s157
          %s159 = sand.u32 %s69, 1
          %s160 = scalar_lea.vmem [#allocation5], %s159
          %s162 = ssub.s32 16, 16
          %163 = vsyncadd %s158, %s162
          %s164 = sadd.s32 %s25, %s24
          %s165 = smul.addr %s164, 16
          %s166 = scalar_lea.hbm %s1, %s165
          %s168 = sshll.u32 %s160, 4
          %s169 = int_to_ptr.vmem [resolvable:$true] %s168
          %171 = dma.hbm_to_vmem [thread:$0]  %s166, 16, %s169, %s158
        $region24: #{tpu_custom_call.1} parent=15 // pred_fallthru
          _
      $region16: #{tpu_custom_call.1} parent=5 // pred_fallthru
        _
      %p172 = scmp.le.s32.totalorder 1, %s17
      %p173 = scmp.lt.s32.totalorder %s17, 3
      %p174 = pnand %p172, %p173
      %p175 = pneg %p174
      // Predicated region
      $region25: #{tpu_custom_call.1} parent=5 // pred_check
        _
      $region26: #{tpu_custom_call.1} parent=5 // pred_check_branch
        %177 = sbr.rel (%p174) target = $region28
      $region27: #{tpu_custom_call.1} parent=5 // pred_region
        %s178 = ssub.s32 %s17, 1
        %s179 = sand.u32 %s44, 1
        %s180 = scalar_lea.sflag [#allocation3], %s179
        %s181 = sand.u32 %s44, 1
        %s182 = smul.addr %s181, 80
        %s183 = scalar_lea.vmem [#allocation2], %s182
        // Predicated region
        $region29: #{tpu_custom_call.1} parent=27 // pred_check
          %p184 = pneg %p57
        $region30: #{tpu_custom_call.1} parent=27 // pred_check_branch
          %186 = sbr.rel (%p184) target = $region32
        $region31: #{tpu_custom_call.1} parent=27 // pred_region
          %187 = dma.done %s180, 1280
        $region32: #{tpu_custom_call.1} parent=27 // pred_fallthru
          _
        %s188 = sand.u32 %s72, 1
        %s189 = scalar_lea.sflag [#allocation6], %s188
        %s190 = sand.u32 %s72, 1
        %s191 = scalar_lea.vmem [#allocation5], %s190
        // Predicated region
        $region33: #{tpu_custom_call.1} parent=27 // pred_check
          %p192 = pneg %p85
        $region34: #{tpu_custom_call.1} parent=27 // pred_check_branch
          %194 = sbr.rel (%p192) target = $region36
        $region35: #{tpu_custom_call.1} parent=27 // pred_region
          %195 = dma.done %s189, 16
        $region36: #{tpu_custom_call.1} parent=27 // pred_fallthru
          _
        %s196 = sand.u32 %s44, 1
        %s197 = scalar_lea.sflag [#allocation3], %s196
        %s198 = sand.u32 %s44, 1
        %s199 = smul.addr %s198, 80
        %s200 = scalar_lea.vmem [#allocation2], %s199
        %p201 = pneg %p57
        %p202 = pneg %p54
        %s203 = sand.u32 %s72, 1
        %s204 = scalar_lea.sflag [#allocation6], %s203
        %s205 = sand.u32 %s72, 1
        %s206 = scalar_lea.vmem [#allocation5], %s205
        %p207 = pneg %p85
        %p208 = pneg %p82
        %p209 = pneg %p113
        %p210 = pneg %p110
        %s211 = sand.u32 %s100, 1
        %s212 = scalar_lea.sflag [#allocation4], %s211
        %s213 = sand.u32 %s100, 1
        %s214 = smul.addr %s213, 8
        %s215 = scalar_lea.vmem [#allocation7], %s214
        %v216 = vld [vmem:[%s183] sm:$0xff]
        %v217 = vld [vmem:[%s183 + $0x8] sm:$0xff]
        %v218 = vld [vmem:[%s183 + $0x10] sm:$0xff]
        %v219 = vld [vmem:[%s183 + $0x18] sm:$0xff]
        %v220 = vld [vmem:[%s183 + $0x20] sm:$0xff]
        %v221 = vld [vmem:[%s183 + $0x28] sm:$0xff]
        %v222 = vld [vmem:[%s183 + $0x30] sm:$0xff]
        %v223 = vld [vmem:[%s183 + $0x38] sm:$0xff]
        %v224 = vld [vmem:[%s183 + $0x40] sm:$0xff]
        %v225 = vld [vmem:[%s183 + $0x48] sm:$0xff]
        %v226 = vmax.f32 %v216, %v220
        %v227 = vmax.f32 %v217, %v221
        %v228 = vmax.f32 %v218, %v222
        %v229 = vmax.f32 %v219, %v223
        %v230 = vmax.f32 %v226, %v224
        %v231 = vmax.f32 %v227, %v225
        %v232 = vmax.f32 %v230, %v231
        %v233 = vmax.f32 %v228, %v229
        %v234 = vmax.f32 %v232, %v233
        %v235 = vrot.slane %v234, 4
        %v236 = vmax.f32 %v234, %v235
        %v237 = vrot.slane %v236, 2
        %v238 = vmax.f32 %v236, %v237
        %v239 = vrot.slane %v238, 1
        %v240 = vmax.f32 %v238, %v239
        %v241 = vsub.f32 %v216, %v240
        %v242 = vsub.f32 %v217, %v240
        %v243 = vsub.f32 %v218, %v240
        %v244 = vsub.f32 %v219, %v240
        %v245 = vsub.f32 %v220, %v240
        %v246 = vsub.f32 %v221, %v240
        %v247 = vsub.f32 %v222, %v240
        %v248 = vsub.f32 %v223, %v240
        %v249 = vsub.f32 %v224, %v240
        %v250 = vsub.f32 %v225, %v240
        %v251 = vmul.f32 %v241, 1.442695
        %v252 = vpow.pop %v251
        %v253 = vmul.f32 %v242, 1.442695
        %v254 = vpow.pop %v253
        %v255 = vmul.f32 %v243, 1.442695
        %v256 = vpow.pop %v255
        %v257 = vmul.f32 %v244, 1.442695
        %v258 = vpow.pop %v257
        %v259 = vmul.f32 %v245, 1.442695
        %v260 = vpow.pop %v259
        %v261 = vmul.f32 %v246, 1.442695
        %v262 = vpow.pop %v261
        %v263 = vmul.f32 %v247, 1.442695
        %v264 = vpow.pop %v263
        %v265 = vmul.f32 %v248, 1.442695
        %v266 = vpow.pop %v265
        %v267 = vmul.f32 %v249, 1.442695
        %v268 = vpow.pop %v267
        %v269 = vmul.f32 %v250, 1.442695
        %v270 = vpow.pop %v269
        %v271 = vadd.f32 %v252, %v254
        %v272 = vadd.f32 %v271, %v256
        %v273 = vadd.f32 %v272, %v258
        %v274 = vadd.f32 %v273, %v260
        %v275 = vadd.f32 %v274, %v262
        %v276 = vadd.f32 %v275, %v264
        %v277 = vadd.f32 %v276, %v266
        %v278 = vadd.f32 %v277, %v268
        %v279 = vadd.f32 %v278, %v270
        %v280 = vrot.slane %v279, 4
        %v281 = vadd.f32 %v279, %v280
        %v282 = vrot.slane %v281, 2
        %v283 = vadd.f32 %v281, %v282
        %v284 = vrot.slane %v283, 1
        %v285 = vadd.f32 %v283, %v284
        %v286 = vlog2.pop %v285
        %v287 = vmul.f32 %v286, 0.6931472
        %v288 = vsub.f32 %v241, %v287
        %v289 = vsub.f32 %v242, %v287
        %v290 = vsub.f32 %v243, %v287
        %v291 = vsub.f32 %v244, %v287
        %v292 = vsub.f32 %v245, %v287
        %v293 = vsub.f32 %v246, %v287
        %v294 = vsub.f32 %v247, %v287
        %v295 = vsub.f32 %v248, %v287
        %v296 = vsub.f32 %v249, %v287
        %v297 = vsub.f32 %v250, %v287
        %v298 = vld [vmem:[%s191] sm:$0x1]
        %v299 = vcvt.s32.f32 %v298
        %v300 = vlaneseq
        %v301 = vshrl.u32 %v300, 7
        %v302 = vadd.s32 %v301, 8
        %v303 = vadd.s32 %v301, 16
        %v304 = vadd.s32 %v301, 24
        %v305 = vadd.s32 %v301, 32
        %v306 = vadd.s32 %v301, 40
        %v307 = vadd.s32 %v301, 48
        %v308 = vadd.s32 %v301, 56
        %v309 = vadd.s32 %v301, 64
        %v310 = vadd.s32 %v301, 72
        %v311 = vcvt.s32.f32 %v301
        %v312 = vcvt.s32.f32 %v302
        %v313 = vcvt.s32.f32 %v303
        %v314 = vcvt.s32.f32 %v304
        %v315 = vcvt.s32.f32 %v305
        %v316 = vcvt.s32.f32 %v306
        %v317 = vcvt.s32.f32 %v307
        %v318 = vcvt.s32.f32 %v308
        %v319 = vcvt.s32.f32 %v309
        %v320 = vcvt.s32.f32 %v310
        %v322 = vlaneseq
        %v323 = vshrl.u32 %v322, 7
        %v324 = vsub.s32 0, %v323
        %v325 = vrot.slane %v299, %v324
        %v327 = vsub.f32 %v311, %v325
        %v328 = vsub.f32 %v312, %v325
        %v329 = vsub.f32 %v313, %v325
        %v330 = vsub.f32 %v314, %v325
        %v331 = vsub.f32 %v315, %v325
        %v332 = vsub.f32 %v316, %v325
        %v333 = vsub.f32 %v317, %v325
        %v334 = vsub.f32 %v318, %v325
        %v335 = vsub.f32 %v319, %v325
        %v336 = vsub.f32 %v320, %v325
        %v337 = vmul.f32 %v327, -1.0
        %v338 = vmul.f32 %v328, -1.0
        %v339 = vmul.f32 %v329, -1.0
        %v340 = vmul.f32 %v330, -1.0
        %v341 = vmul.f32 %v331, -1.0
        %v342 = vmul.f32 %v332, -1.0
        %v343 = vmul.f32 %v333, -1.0
        %v344 = vmul.f32 %v334, -1.0
        %v345 = vmul.f32 %v335, -1.0
        %v346 = vmul.f32 %v336, -1.0
        %v347 = vmul.f32 %v337, %v327
        %v348 = vmul.f32 %v338, %v328
        %v349 = vmul.f32 %v339, %v329
        %v350 = vmul.f32 %v340, %v330
        %v351 = vmul.f32 %v341, %v331
        %v352 = vmul.f32 %v342, %v332
        %v353 = vmul.f32 %v343, %v333
        %v354 = vmul.f32 %v344, %v334
        %v355 = vmul.f32 %v345, %v335
        %v356 = vmul.f32 %v346, %v336
        %v357 = vmul.f32 %v347, 1.442695
        %v358 = vpow.pop %v357
        %v359 = vmul.f32 %v348, 1.442695
        %v360 = vpow.pop %v359
        %v361 = vmul.f32 %v349, 1.442695
        %v362 = vpow.pop %v361
        %v363 = vmul.f32 %v350, 1.442695
        %v364 = vpow.pop %v363
        %v365 = vmul.f32 %v351, 1.442695
        %v366 = vpow.pop %v365
        %v367 = vmul.f32 %v352, 1.442695
        %v368 = vpow.pop %v367
        %v369 = vmul.f32 %v353, 1.442695
        %v370 = vpow.pop %v369
        %v371 = vmul.f32 %v354, 1.442695
        %v372 = vpow.pop %v371
        %v373 = vmul.f32 %v355, 1.442695
        %v374 = vpow.pop %v373
        %v375 = vmul.f32 %v356, 1.442695
        %v376 = vpow.pop %v375
        %v377 = vmul.f32 %v358, %v288
        %v378 = vmul.f32 %v360, %v289
        %v379 = vmul.f32 %v362, %v290
        %v380 = vmul.f32 %v364, %v291
        %v381 = vmul.f32 %v366, %v292
        %v382 = vmul.f32 %v368, %v293
        %v383 = vmul.f32 %v370, %v294
        %v384 = vmul.f32 %v372, %v295
        %v385 = vmul.f32 %v374, %v296
        %v386 = vmul.f32 %v376, %v297
        %v387 = vadd.f32 %v377, %v378
        %v388 = vadd.f32 %v387, %v379
        %v389 = vadd.f32 %v388, %v380
        %v390 = vadd.f32 %v389, %v381
        %v391 = vadd.f32 %v390, %v382
        %v392 = vadd.f32 %v391, %v383
        %v393 = vadd.f32 %v392, %v384
        %v394 = vadd.f32 %v393, %v385
        %v395 = vadd.f32 %v394, %v386
        %396 = vst [vmem:[%s215] sm:$0xff] %v395
        %s397 = sand.u32 %s100, 1
        %s398 = scalar_lea.sflag [#allocation4], %s397
        %s399 = sand.u32 %s100, 1
        %s400 = smul.addr %s399, 8
        %s401 = scalar_lea.vmem [#allocation7], %s400
        // Predicated region
        $region37: #{tpu_custom_call.1} parent=27 // pred_check
          %p402 = pneg %p110
        $region38: #{tpu_custom_call.1} parent=27 // pred_check_branch
          %404 = sbr.rel (%p402) target = $region40
        $region39: #{tpu_custom_call.1} parent=27 // pred_region
          %s406 = ssub.s32 128, 128
          %407 = vsyncadd %s398, %s406
          %s408 = sadd.s32 %s27, %s26
          %s409 = smul.addr %s408, 128
          %s410 = scalar_lea.hbm %s2, %s409
          %s412 = sshll.u32 %s401, 4
          %s413 = int_to_ptr.vmem [resolvable:$true] %s412
          %415 = dma.vmem_to_hbm [thread:$0]  %s413, 128, %s410, %s398
        $region40: #{tpu_custom_call.1} parent=27 // pred_fallthru
          _
      $region28: #{tpu_custom_call.1} parent=5 // pred_fallthru
        _
      %p416 = scmp.le.s32.totalorder 2, %s17
      // Predicated region
      $region41: #{tpu_custom_call.1} parent=5 // pred_check
        %p417 = pneg %p416
      $region42: #{tpu_custom_call.1} parent=5 // pred_check_branch
        %419 = sbr.rel (%p417) target = $region44
      $region43: #{tpu_custom_call.1} parent=5 // pred_region
        %s420 = ssub.s32 %s17, 2
        // Predicated region
        $region45: #{tpu_custom_call.1} parent=43 // pred_check
          %p421 = pneg %p116
        $region46: #{tpu_custom_call.1} parent=43 // pred_check_branch
          %423 = sbr.rel (%p421) target = $region48
        $region47: #{tpu_custom_call.1} parent=43 // pred_region
          %s424 = sand.u32 %s101, 1
          %s425 = scalar_lea.sflag [#allocation4], %s424
          %s426 = sand.u32 %s101, 1
          %s427 = smul.addr %s426, 8
          %s428 = scalar_lea.vmem [#allocation7], %s427
          %429 = dma.done %s425, 128
        $region48: #{tpu_custom_call.1} parent=43 // pred_fallthru
          _
      $region44: #{tpu_custom_call.1} parent=5 // pred_fallthru
        _
    $region6: #{tpu_custom_call.1} parent=1 // loop_footer
      %s21 = sadd.s32 1, %s17
    $region7: #{tpu_custom_call.1} parent=1 // loop_footer_branch
      %16 = sbr.rel target = $region3
    $region8: #{tpu_custom_call.1} parent=1 // loop_exit
      _
    %430 = vsyncpa [#allocation3], 1
    %s431 = scalar_lea.sflag [#allocation3], 1
    %432 = vsyncpa %s431, 1
    %433 = vsyncpa [#allocation6], 1
    %s434 = scalar_lea.sflag [#allocation6], 1
    %435 = vsyncpa %s434, 1
    %436 = vsyncpa [#allocation4], 1
    %s437 = scalar_lea.sflag [#allocation4], 1
    %438 = vsyncpa %s437, 1

</llo_original>
